<compile_context>
chip_gen: v7x
topology: tpu7x:2x2x1
jax: 0.10.0
libtpu: 0.0.40
codegen_flags: <defaults>
</compile_context>

<pallas_src>
import jax
import jax.numpy as jnp
from jax.experimental import pallas as pl
from jax.experimental.pallas import tpu as pltpu


def _round_up(x: int, m: int) -> int:
    return ((x + m - 1) // m) * m


def _vmem_capacity_bytes() -> int:
    try:
        return int(pltpu.get_tpu_info().vmem_capacity_bytes)
    except Exception:
        return 64 * 1024 * 1024  # conservative fallback (v7x per-core size)


def _pick_tk(h_pad: int, w_itemsize: int, budget: int) -> int:
    """Largest multiple-of-128 divisor of h_pad whose double-buffered
    (TK, h_pad) weight block fits within `budget` bytes."""
    best = 128
    tk = 128
    while tk <= h_pad:
        if h_pad % tk == 0 and 2 * tk * h_pad * w_itemsize <= budget:
            best = tk
        tk += 128
    return best


def _make_kernel(with_ctrl: bool, single_k: bool):
    """Kernel factory.

    with_ctrl: control applied WITH normalization (the non-normalized control
               add is folded into the bias by the wrapper, so that path uses
               the plain matmul+bias kernel).
    single_k : weight fully resident (no contraction-dim grid axis work).
    """

    def _matmul(x_ref, w_ref):
        x = x_ref[...]
        if x.dtype != w_ref.dtype:          # keep MXU operands the same dtype
            x = x.astype(w_ref.dtype)
        return jax.lax.dot_general(
            x, w_ref[...],
            dimension_numbers=(((1,), (0,)), ((), ())),   # [M,K] x [K,N], no transpose
            preferred_element_type=jnp.float32,
        )

    def _epilogue(y, ctrl_ref, o_ref):
        if with_ctrl:
            # sum_pre BEFORE building mod so y's storage can be reused for mod.
            sum_pre = jnp.sum(y * y, axis=-1, keepdims=True)
            mod = y + ctrl_ref[...]                        # ctrl already * alpha, f32
            sum_post = jnp.sum(mod * mod, axis=-1, keepdims=True)
            # mod / ||mod|| * ||y|| == mod * rsqrt(sum_post) * sqrt(sum_pre)
            # (no epsilon, matching the torch reference; padded rows are sliced off)
            mod = mod * (jax.lax.rsqrt(sum_post) * jnp.sqrt(sum_pre))
            o_ref[...] = mod.astype(o_ref.dtype)
        else:
            o_ref[...] = y.astype(o_ref.dtype)

    if single_k:
        if with_ctrl:
            def kernel(x_ref, w_ref, b_ref, ctrl_ref, o_ref):
                _epilogue(_matmul(x_ref, w_ref) + b_ref[...], ctrl_ref, o_ref)
        else:
            def kernel(x_ref, w_ref, b_ref, o_ref):
                _epilogue(_matmul(x_ref, w_ref) + b_ref[...], None, o_ref)
    else:
        if with_ctrl:
            def kernel(x_ref, w_ref, b_ref, ctrl_ref, o_ref, acc_ref):
                k = pl.program_id(1)

                @pl.when(k == 0)
                def _():
                    acc_ref[...] = jnp.zeros_like(acc_ref)

                acc_ref[...] += _matmul(x_ref, w_ref)

                @pl.when(k == pl.num_programs(1) - 1)
                def _():
                    _epilogue(acc_ref[...] + b_ref[...], ctrl_ref, o_ref)
        else:
            def kernel(x_ref, w_ref, b_ref, o_ref, acc_ref):
                k = pl.program_id(1)

                @pl.when(k == 0)
                def _():
                    acc_ref[...] = jnp.zeros_like(acc_ref)

                acc_ref[...] += _matmul(x_ref, w_ref)

                @pl.when(k == pl.num_programs(1) - 1)
                def _():
                    _epilogue(acc_ref[...] + b_ref[...], None, o_ref)

    return kernel


def control_block_forward(x, w, b, control=None, *, alpha=0.0, normalize=False,
                          compute_dtype=jnp.bfloat16, tm=None, tk=None):
    """ControlBlock forward.

    x       : [B, S, H] activations.
    w       : [H, H]    PyTorch Linear.weight ([out_features, in_features]).
    b       : [H]       Linear.bias.
    control : [H] or None (None -> just the wrapped Linear, like the module).
    compute_dtype : MXU operand dtype (default bf16; pass jnp.float32 for a
                    full-precision matmul). Accumulation/epilogue is always f32.
    tm, tk  : optional row-tile / contraction-tile overrides (tk must be a
              multiple of 128 dividing the padded hidden dim).
    """
    B, S, H = x.shape
    M = B * S
    out_dtype = x.dtype
    cdtype = jnp.dtype(compute_dtype) if compute_dtype is not None else jnp.dtype(x.dtype)

    apply_control = control is not None
    with_ctrl = apply_control and bool(normalize)

    vmem_cap = _vmem_capacity_bytes()
    H_pad = _round_up(max(H, 128), 128)            # lane-dense last dim

    x_itemsize = jnp.dtype(x.dtype).itemsize
    w_itemsize = cdtype.itemsize
    out_itemsize = jnp.dtype(out_dtype).itemsize

    # ---- contraction tiling / weight residency ----
    if tk is not None:
        TK = int(tk)
        assert TK % 128 == 0 and H_pad % TK == 0, "tk must be a multiple of 128 dividing padded H"
    else:
        weight_budget = int(0.4 * vmem_cap)
        full_w_bytes = H_pad * H_pad * w_itemsize
        TK = H_pad if full_w_bytes <= weight_budget else _pick_tk(H_pad, w_itemsize, weight_budget)
    single_k = (TK == H_pad)
    nk = H_pad // TK

    # ---- row tiling ----
    tm_default = int(tm) if tm is not None else (512 if vmem_cap > 96 * 2**20 else 256)
    TM = min(tm_default, _round_up(M, 8))
    TM = (TM // 256) * 256 if TM >= 256 else _round_up(TM, 8)   # MXU row occupancy
    if TM >= 512 and pl.cdiv(M, TM) == 1:
        TM //= 2                                   # give both TensorCores a tile (v7x)

    def _vmem_need(tm_rows):
        return (2 * tm_rows * TK * x_itemsize                          # x tiles (2-buf)
                + (1 if single_k else 2) * TK * H_pad * w_itemsize     # weight
                + 2 * tm_rows * H_pad * out_itemsize                   # out tiles (2-buf)
                + (0 if single_k else tm_rows * H_pad * 4)             # f32 accumulator
                + 2 * tm_rows * H_pad * 4                              # f32 y/mod temps
                + 4 * H_pad * 4)                                       # bias / control
    while _vmem_need(TM) > int(0.8 * vmem_cap) and TM > 256:
        TM = max(256, TM // 2)

    M_pad = _round_up(M, TM)
    grid = (M_pad // TM, nk)

    vmem_limit = int(min(max(_vmem_need(TM) * 5 // 4, 32 * 1024 * 1024),
                         int(0.87 * vmem_cap)))

    # ---- one-time operand prep (amortized over all row tiles / all calls) ----
    x2 = x.reshape(M, H)
    if M_pad != M or H_pad != H:
        x2 = jnp.pad(x2, ((0, M_pad - M), (0, H_pad - H)))

    # Pre-transpose Linear.weight [out, in] -> [in, out] once; cast to MXU dtype.
    wt = w.T.astype(cdtype)
    if H_pad != H:
        wt = jnp.pad(wt, ((0, H_pad - H), (0, H_pad - H)))

    b_f32 = b.reshape(-1).astype(jnp.float32)
    ctrl_f32 = None
    if apply_control:
        ctrl_f32 = jnp.asarray(control).reshape(-1).astype(jnp.float32) * jnp.float32(alpha)
        if not normalize:
            # operator = torch.add and no renormalization -> fold into the bias.
            b_f32 = b_f32 + ctrl_f32
    b2 = b_f32.reshape(1, H)
    if H_pad != H:
        b2 = jnp.pad(b2, ((0, 0), (0, H_pad - H)))

    operands = [x2, wt, b2]
    w_spec = (pl.BlockSpec((TK, H_pad), lambda i, k: (k, 0), pipeline_mode=pl.Buffered(1))
              if single_k else
              pl.BlockSpec((TK, H_pad), lambda i, k: (k, 0)))
    in_specs = [
        pl.BlockSpec((TM, TK), lambda i, k: (i, k)),                   # x row/k tile
        w_spec,                                                        # weight
        pl.BlockSpec((1, H_pad), lambda i, k: (0, 0),
                     pipeline_mode=pl.Buffered(1)),                    # bias (f32)
    ]
    if with_ctrl:
        ctrl2 = ctrl_f32.reshape(1, H)
        if H_pad != H:
            ctrl2 = jnp.pad(ctrl2, ((0, 0), (0, H_pad - H)))
        operands.append(ctrl2)
        in_specs.append(pl.BlockSpec((1, H_pad), lambda i, k: (0, 0),
                                     pipeline_mode=pl.Buffered(1)))    # control*alpha (f32)

    scratch_shapes = [] if single_k else [pltpu.VMEM((TM, H_pad), jnp.float32)]

    kernel = _make_kernel(with_ctrl, single_k)

    out2 = pl.pallas_call(
        kernel,
        out_shape=jax.ShapeDtypeStruct((M_pad, H_pad), out_dtype),
        grid_spec=pltpu.PrefetchScalarGridSpec(
            num_scalar_prefetch=0,
            grid=grid,
            in_specs=in_specs,
            out_specs=pl.BlockSpec((TM, H_pad), lambda i, k: (i, 0)),
            scratch_shapes=scratch_shapes,
        ),
        compiler_params=pltpu.CompilerParams(
            dimension_semantics=("parallel", "arbitrary"),   # row tiles || , K-axis reduction
            vmem_limit_bytes=vmem_limit,
        ),
    )(*operands)

    return out2[:M, :H].reshape(B, S, H)


# TODO(synk): arbitrary `operator` callables and tuple block outputs from the
# wrapped layer are not fused here; only the torch.add path on a single
# activation tensor (the module's default/typical configuration) is implemented.


def _reference(x, w, b, control, alpha, normalize):
    y = jnp.einsum("bsh,oh->bso", x.astype(jnp.float32), w.astype(jnp.float32),
                   precision="highest") + b.astype(jnp.float32)
    if control is None:
        return y
    norm_pre = jnp.linalg.norm(y, axis=-1, keepdims=True)
    mod = y + control.reshape(1, 1, -1).astype(jnp.float32) * alpha
    if normalize:
        norm_post = jnp.linalg.norm(mod, axis=-1, keepdims=True)
        mod = mod / norm_post * norm_pre
    return mod


if __name__ == "__main__":
    key = jax.random.PRNGKey(0)
    kx, kw, kb, kc = jax.random.split(key, 4)

    # Small ControlBlock-shaped problem: [batch=2, seq=8, hidden=32].
    B, S, H = 2, 8, 32
    x = jax.random.normal(kx, (B, S, H), dtype=jnp.float32)
    w = jax.random.normal(kw, (H, H), dtype=jnp.float32) * 0.1    # Linear.weight [out, in]
    b = jax.random.normal(kb, (H,), dtype=jnp.float32) * 0.01     # Linear.bias
    control = jax.random.normal(kc, (H,), dtype=jnp.float32)      # 1-D control vector
    alpha = 0.5

    # Case 1: control applied with normalization, full-precision (f32) MXU path.
    out = jax.block_until_ready(control_block_forward(
        x, w, b, control, alpha=alpha, normalize=True, compute_dtype=jnp.float32))
    ref = _reference(x, w, b, control, alpha, True)
    assert out.shape == (B, S, H)
    assert jnp.allclose(out, ref, atol=1e-4, rtol=1e-4), "mismatch vs reference (normalize, f32)"

    # Case 2: control without normalization (folded into bias), default bf16 MXU.
    out2 = jax.block_until_ready(control_block_forward(
        x, w, b, control, alpha=alpha, normalize=False))
    ref2 = _reference(x, w, b, control, alpha, False)
    assert jnp.allclose(out2, ref2, atol=3e-2, rtol=3e-2), "mismatch vs reference (no normalize, bf16)"

    # Case 3: control=None -> just the wrapped block.
    out3 = jax.block_until_ready(control_block_forward(
        x, w, b, None, compute_dtype=jnp.float32))
    ref3 = _reference(x, w, b, None, 0.0, False)
    assert jnp.allclose(out3, ref3, atol=1e-4, rtol=1e-4), "mismatch vs reference (no control)"

    # Case 4: K-tiled path (contraction grid axis + f32 accumulator), forced via tk.
    H2 = 256
    x4 = jax.random.normal(kx, (B, S, H2), dtype=jnp.float32)
    w4 = jax.random.normal(kw, (H2, H2), dtype=jnp.float32) * 0.05
    b4 = jax.random.normal(kb, (H2,), dtype=jnp.float32) * 0.01
    c4 = jax.random.normal(kc, (H2,), dtype=jnp.float32)
    out4 = jax.block_until_ready(control_block_forward(
        x4, w4, b4, c4, alpha=alpha, normalize=True, compute_dtype=jnp.float32, tk=128))
    ref4 = _reference(x4, w4, b4, c4, alpha, True)
    assert jnp.allclose(out4, ref4, atol=1e-3, rtol=1e-3), "mismatch vs reference (K-tiled)"

    print("KERNEL_OK")
</pallas_src>

<mosaic_0001>
module attributes {stable_mosaic.version = 11 : i64} {
  func.func @kernel(%arg0: i32, %arg1: i32, %arg2: memref<16x128xf32, #tpu.memory_space<vmem>>, %arg3: memref<128x128xf32, #tpu.memory_space<vmem>>, %arg4: memref<1x128xf32, #tpu.memory_space<vmem>>, %arg5: memref<1x128xf32, #tpu.memory_space<vmem>>, %arg6: memref<16x128xf32, #tpu.memory_space<vmem>>) attributes {dimension_semantics = [#tpu.dimension_semantics<parallel>, #tpu.dimension_semantics<arbitrary>], iteration_bounds = array<i64: 1, 1>, scalar_prefetch = 0 : i64, scratch_operands = 0 : i64, tpu.core_type = #tpu.core_type<tc>, window_params = [{transform_indices = @transform_0, window_bounds = array<i64: 16, 128>}, {pipeline_mode = #tpu.pipeline_mode<synchronous>, transform_indices = @transform_1, window_bounds = array<i64: 128, 128>}, {pipeline_mode = #tpu.pipeline_mode<synchronous>, transform_indices = @transform_2, window_bounds = array<i64: 1, 128>}, {pipeline_mode = #tpu.pipeline_mode<synchronous>, transform_indices = @transform_3, window_bounds = array<i64: 1, 128>}, {transform_indices = @transform_4, window_bounds = array<i64: 16, 128>}]} {
    %c0 = arith.constant 0 : index
    %c0_0 = arith.constant 0 : index
    %0 = vector.load %arg2[%c0, %c0_0] : memref<16x128xf32, #tpu.memory_space<vmem>>, vector<16x128xf32>
    %c0_1 = arith.constant 0 : index
    %c0_2 = arith.constant 0 : index
    %1 = vector.load %arg3[%c0_1, %c0_2] : memref<128x128xf32, #tpu.memory_space<vmem>>, vector<128x128xf32>
    %cst = arith.constant dense<0.000000e+00> : vector<16x128xf32>
    %2 = tpu.matmul %0, %1, %cst {dimension_numbers = #tpu.dot_dimension_numbers<[1], [0], [0], [1], [0, 0, 1, 1], [], []>} : vector<16x128xf32>, vector<128x128xf32>, vector<16x128xf32> -> vector<16x128xf32>
    %c0_3 = arith.constant 0 : index
    %c0_4 = arith.constant 0 : index
    %3 = vector.load %arg4[%c0_3, %c0_4] : memref<1x128xf32, #tpu.memory_space<vmem>>, vector<1x128xf32>
    %4 = vector.broadcast %3 : vector<1x128xf32> to vector<16x128xf32>
    %5 = arith.addf %2, %4 : vector<16x128xf32>
    %6 = arith.mulf %5, %5 : vector<16x128xf32>
    %cst_5 = arith.constant dense<0.000000e+00> : vector<16xf32>
    %7 = vector.multi_reduction <add>, %6, %cst_5 [1] : vector<16x128xf32> to vector<16xf32>
    %8 = vector.shape_cast %7 : vector<16xf32> to vector<16x1xf32>
    %c0_6 = arith.constant 0 : index
    %c0_7 = arith.constant 0 : index
    %9 = vector.load %arg5[%c0_6, %c0_7] : memref<1x128xf32, #tpu.memory_space<vmem>>, vector<1x128xf32>
    %10 = vector.broadcast %9 : vector<1x128xf32> to vector<16x128xf32>
    %11 = arith.addf %5, %10 : vector<16x128xf32>
    %12 = arith.mulf %11, %11 : vector<16x128xf32>
    %cst_8 = arith.constant dense<0.000000e+00> : vector<16xf32>
    %13 = vector.multi_reduction <add>, %12, %cst_8 [1] : vector<16x128xf32> to vector<16xf32>
    %14 = vector.shape_cast %13 : vector<16xf32> to vector<16x1xf32>
    %15 = math.rsqrt %14 : vector<16x1xf32>
    %16 = math.sqrt %8 : vector<16x1xf32>
    %17 = arith.mulf %15, %16 : vector<16x1xf32>
    %18 = vector.broadcast %17 : vector<16x1xf32> to vector<16x128xf32>
    %19 = arith.mulf %11, %18 : vector<16x128xf32>
    %c0_9 = arith.constant 0 : index
    %c0_10 = arith.constant 0 : index
    %20 = vector.load %arg6[%c0_9, %c0_10] : memref<16x128xf32, #tpu.memory_space<vmem>>, vector<16x128xf32>
    tpu.vector_store %arg6[%c0_9, %c0_10], %19 {strides = array<i32>} : memref<16x128xf32, #tpu.memory_space<vmem>>, vector<16x128xf32>,
    return
  }
  func.func @transform_0(%arg0: i32, %arg1: i32) -> (i32, i32) {
    %c0_i32 = arith.constant 0 : i32
    return %arg0, %arg1 : i32, i32
  }
  func.func @transform_1(%arg0: i32, %arg1: i32) -> (i32, i32) {
    %c0_i32 = arith.constant 0 : i32
    %c0_i32_0 = arith.constant 0 : i32
    return %arg1, %c0_i32 : i32, i32
  }
  func.func @transform_2(%arg0: i32, %arg1: i32) -> (i32, i32) {
    %c0_i32 = arith.constant 0 : i32
    %c0_i32_0 = arith.constant 0 : i32
    %c0_i32_1 = arith.constant 0 : i32
    return %c0_i32, %c0_i32_0 : i32, i32
  }
  func.func @transform_3(%arg0: i32, %arg1: i32) -> (i32, i32) {
    %c0_i32 = arith.constant 0 : i32
    %c0_i32_0 = arith.constant 0 : i32
    %c0_i32_1 = arith.constant 0 : i32
    return %c0_i32, %c0_i32_0 : i32, i32
  }
  func.func @transform_4(%arg0: i32, %arg1: i32) -> (i32, i32) {
    %c0_i32 = arith.constant 0 : i32
    %c0_i32_0 = arith.constant 0 : i32
    return %arg0, %c0_i32 : i32, i32
  }
}

</mosaic_0001>

<llo_original>
// kernel: tpu_custom_call.1
$region0: #{tpu_custom_call.1}
  #allocation0 [shape = 'u32[]', space=smem, size = 0x4, offset = 0x4, fixed_abs, tag = 'smem constant byte address 0x4 - core index']
  #allocation1 [shape = 'u32[144,128]{1,0:T(1,128)}', space=vmem, size = 0x12000, scoped, tag = 'internal scratch']
  %s0 = inlined_call_operand.hbm [shape: f32[16,128], index: 0, kind: input, shape index: {}]
  %s1 = inlined_call_operand.hbm [shape: f32[128,128], index: 1, kind: input, shape index: {}]
  %s2 = inlined_call_operand.vmem [shape: f32[1,128], index: 2, kind: input, shape index: {}]
  %s3 = inlined_call_operand.vmem [shape: f32[1,128], index: 3, kind: input, shape index: {}]
  %s4 = inlined_call_operand.hbm [shape: f32[16,128], index: 4, kind: output, shape index: {}]
  %s5 = sld [smem:[#allocation0]]
  $region34: #{tpu_custom_call.1} parent=0
    _
  %s7 = ssub.s32 1, %s5
  %s8 = scalar_select 0, %s7, %s5
  $region1: #{tpu_custom_call.1} parent=0
    #allocation2 [shape = 'u8[8192]{0}', space=vmem, size = 0x2000, scoped, tag = 'input window, operand 0, single buffered']
    #allocation3 [shape = 's32[1]{0}', space=sflag, size = 0x4, scoped, tag = 'scoped memory for tpu_custom_call.1']
    #allocation4 [shape = 's32[1]{0}', space=sflag, size = 0x4, scoped, tag = 'scoped memory for tpu_custom_call.1']
    #allocation5 [shape = 'u8[65536]{0}', space=vmem, size = 0x10000, scoped, tag = 'input window, operand 1, single buffered']
    #allocation6 [shape = 's32[1]{0}', space=sflag, size = 0x4, scoped, tag = 'scoped memory for tpu_custom_call.1']
    #allocation7 [shape = 'u8[8192]{0}', space=vmem, size = 0x2000, scoped, tag = 'output window, operand 0, single buffered']
    %9 = vsyncpa [#allocation3], 0
    %10 = vsyncpa [#allocation6], 0
    %11 = vsyncpa [#allocation4], 0
    // Predicated region
    $region2: #{tpu_custom_call.1} parent=1 // pred_check
      _
    $region3: #{tpu_custom_call.1} parent=1 // pred_check_branch
      %13 = sbr.rel (0) target = $region5
    $region4: #{tpu_custom_call.1} parent=1 // pred_region
      %s15 = ssub.s32 256, 256
      %16 = vsyncadd [#allocation3], %s15
      %s17 = sshll.u32 [#allocation2], 4
      %s18 = int_to_ptr.vmem [resolvable:$true] %s17
      %23 = dma.hbm_to_vmem [thread:$0]  %s0, 256, %s18, [#allocation3], 128, 128, 8
    $region5: #{tpu_custom_call.1} parent=1 // pred_fallthru
      _
    // Predicated region
    $region6: #{tpu_custom_call.1} parent=1 // pred_check
      _
    $region7: #{tpu_custom_call.1} parent=1 // pred_check_branch
      %25 = sbr.rel (0) target = $region9
    $region8: #{tpu_custom_call.1} parent=1 // pred_region
      %s27 = ssub.s32 2048, 2048
      %28 = vsyncadd [#allocation6], %s27
      %s29 = sshll.u32 [#allocation5], 4
      %s30 = int_to_ptr.vmem [resolvable:$true] %s29
      %35 = dma.hbm_to_vmem [thread:$0]  %s1, 2048, %s30, [#allocation6], 128, 128, 8
    $region9: #{tpu_custom_call.1} parent=1 // pred_fallthru
      _
    // Predicated region
    $region10: #{tpu_custom_call.1} parent=1 // pred_check
      _
    $region11: #{tpu_custom_call.1} parent=1 // pred_check_branch
      %37 = sbr.rel (0) target = $region13
    $region12: #{tpu_custom_call.1} parent=1 // pred_region
      _
    $region13: #{tpu_custom_call.1} parent=1 // pred_fallthru
      _
    // Predicated region
    $region14: #{tpu_custom_call.1} parent=1 // pred_check
      _
    $region15: #{tpu_custom_call.1} parent=1 // pred_check_branch
      %39 = sbr.rel (0) target = $region17
    $region16: #{tpu_custom_call.1} parent=1 // pred_region
      _
    $region17: #{tpu_custom_call.1} parent=1 // pred_fallthru
      _
    // Predicated region
    $region18: #{tpu_custom_call.1} parent=1 // pred_check
      _
    $region19: #{tpu_custom_call.1} parent=1 // pred_check_branch
      %41 = sbr.rel (0) target = $region21
    $region20: #{tpu_custom_call.1} parent=1 // pred_region
      %42 = dma.done [#allocation3], 256
    $region21: #{tpu_custom_call.1} parent=1 // pred_fallthru
      _
    // Predicated region
    $region22: #{tpu_custom_call.1} parent=1 // pred_check
      _
    $region23: #{tpu_custom_call.1} parent=1 // pred_check_branch
      %44 = sbr.rel (0) target = $region25
    $region24: #{tpu_custom_call.1} parent=1 // pred_region
      %45 = dma.done [#allocation6], 2048
    $region25: #{tpu_custom_call.1} parent=1 // pred_fallthru
      _
    %v46 = vld [vmem:[#allocation2] sm:$0xff]
    %v47 = vld [vmem:[#allocation2 + $0x8] sm:$0xff]
    %v48 = vld [vmem:[#allocation5] sm:$0xff]
    %v49 = vld [vmem:[#allocation5 + $0x8] sm:$0xff]
    %v50 = vld [vmem:[#allocation5 + $0x10] sm:$0xff]
    %v51 = vld [vmem:[#allocation5 + $0x18] sm:$0xff]
    %v52 = vld [vmem:[#allocation5 + $0x20] sm:$0xff]
    %v53 = vld [vmem:[#allocation5 + $0x28] sm:$0xff]
    %v54 = vld [vmem:[#allocation5 + $0x30] sm:$0xff]
    %v55 = vld [vmem:[#allocation5 + $0x38] sm:$0xff]
    %v56 = vld [vmem:[#allocation5 + $0x40] sm:$0xff]
    %v57 = vld [vmem:[#allocation5 + $0x48] sm:$0xff]
    %v58 = vld [vmem:[#allocation5 + $0x50] sm:$0xff]
    %v59 = vld [vmem:[#allocation5 + $0x58] sm:$0xff]
    %v60 = vld [vmem:[#allocation5 + $0x60] sm:$0xff]
    %v61 = vld [vmem:[#allocation5 + $0x68] sm:$0xff]
    %v62 = vld [vmem:[#allocation5 + $0x70] sm:$0xff]
    %v63 = vld [vmem:[#allocation5 + $0x78] sm:$0xff]
    %v64 = vld [vmem:[%s2] sm:$0x1]
    %v66 = vlaneseq
    %v67 = vshrl.u32 %v66, 7
    %v68 = vsub.s32 0, %v67
    %v69 = vrot.slane %v64, %v68
    %71 = vmatprep.subr.mxu0 0.0
    %72 = vmatpush1.msra.mxu0 %v48
    %73 = vmatprep.subr.mxu0 0.0
    %74 = vmatpush1.msra.mxu0 %v49
    %75 = vmatprep.subr.mxu0 0.0
    %76 = vmatpush1.msra.mxu0 %v50
    %77 = vmatprep.subr.mxu0 0.0
    %78 = vmatpush1.msra.mxu0 %v51
    %79 = vmatprep.subr.mxu0 0.0
    %80 = vmatpush1.msra.mxu0 %v52
    %81 = vmatprep.subr.mxu0 0.0
    %82 = vmatpush1.msra.mxu0 %v53
    %83 = vmatprep.subr.mxu0 0.0
    %84 = vmatpush1.msra.mxu0 %v54
    %85 = vmatprep.subr.mxu0 0.0
    %86 = vmatpush1.msra.mxu0 %v55
    %87 = vmatprep.subr.mxu0 0.0
    %88 = vmatpush1.msra.mxu0 %v56
    %89 = vmatprep.subr.mxu0 0.0
    %90 = vmatpush1.msra.mxu0 %v57
    %91 = vmatprep.subr.mxu0 0.0
    %92 = vmatpush1.msra.mxu0 %v58
    %93 = vmatprep.subr.mxu0 0.0
    %94 = vmatpush1.msra.mxu0 %v59
    %95 = vmatprep.subr.mxu0 0.0
    %96 = vmatpush1.msra.mxu0 %v60
    %97 = vmatprep.subr.mxu0 0.0
    %98 = vmatpush1.msra.mxu0 %v61
    %99 = vmatprep.subr.mxu0 0.0
    %100 = vmatpush1.msra.mxu0 %v62
    %101 = vmatprep.subr.mxu0 0.0
    %102 = vmatpush1.msra.mxu0 %v63
    %103 = vmatprep.subr.mxu0 0.0
    %104 = vmatpush1.msra.mxu0 0.0
    %105 = vmatprep.subr.mxu0 0.0
    %106 = vmatpush1.msra.mxu0 0.0
    %107 = vmatprep.subr.mxu0 0.0
    %108 = vmatpush1.msra.mxu0 0.0
    %109 = vmatprep.subr.mxu0 0.0
    %110 = vmatpush1.msra.mxu0 0.0
    %111 = vmatprep.subr.mxu0 0.0
    %112 = vmatpush1.msra.mxu0 0.0
    %113 = vmatprep.subr.mxu0 0.0
    %114 = vmatpush1.msra.mxu0 0.0
    %115 = vmatprep.subr.mxu0 0.0
    %116 = vmatpush1.msra.mxu0 0.0
    %117 = vmatprep.subr.mxu0 0.0
    %118 = vmatpush1.msra.mxu0 0.0
    %119 = vmatprep.subr.mxu0 0.0
    %120 = vmatpush1.msra.mxu0 0.0
    %121 = vmatprep.subr.mxu0 0.0
    %122 = vmatpush1.msra.mxu0 0.0
    %123 = vmatprep.subr.mxu0 0.0
    %124 = vmatpush1.msra.mxu0 0.0
    %125 = vmatprep.subr.mxu0 0.0
    %126 = vmatpush1.msra.mxu0 0.0
    %127 = vmatprep.subr.mxu0 0.0
    %128 = vmatpush1.msra.mxu0 0.0
    %129 = vmatprep.subr.mxu0 0.0
    %130 = vmatpush1.msra.mxu0 0.0
    %131 = vmatprep.subr.mxu0 0.0
    %132 = vmatpush1.msra.mxu0 0.0
    %133 = vmatprep.subr.mxu0 0.0
    %134 = vmatpush1.msra.mxu0 0.0
    %135 = vmatprep.mubr.f32.mxu0 0.0
    %136 = vmatmul.mubr.f32.gmra.mrb[0].mxu0 %v46
    %v137 = vpop.f32.mrb[0].mxu0
    %v138 = vadd.f32 %v69, %v137
    %v139 = vpop.f32.mrb[0].mxu0
    %140 = vmatprep.mubr.f32.mxu0 0.0
    %141 = vmatmul.mubr.f32.gmra.mrb[0].mxu0 %v47
    %v142 = vpop.f32.mrb[0].mxu0
    %v143 = vadd.f32 %v69, %v142
    %v144 = vpop.f32.mrb[0].mxu0
    %145 = vdwg.mxu0
    %v146 = vmul.f32 %v138, %v138
    %v147 = vmul.f32 %v143, %v143
    %148 = vadd.xlane.f32.xlu0 %v146
    %v149 = vpop.xlane.xlu0 %148
    %150 = vadd.xlane.f32.xlu0 %v147
    %v151 = vpop.xlane.xlu0 %150
    %v152 = vld [vmem:[%s3] sm:$0x1]
    %v154 = vlaneseq
    %v155 = vshrl.u32 %v154, 7
    %v156 = vsub.s32 0, %v155
    %v157 = vrot.slane %v152, %v156
    %v159 = vadd.f32 %v138, %v157
    %v160 = vadd.f32 %v143, %v157
    %v161 = vmul.f32 %v159, %v159
    %v162 = vmul.f32 %v160, %v160
    %163 = vadd.xlane.f32.xlu0 %v161
    %v164 = vpop.xlane.xlu0 %163
    %165 = vadd.xlane.f32.xlu0 %v162
    %v166 = vpop.xlane.xlu0 %165
    %v167 = vrsqrt.pop %v164
    %v168 = vrsqrt.pop %v166
    %v169 = vrsqrt.pop %v149
    %v170 = vmul.f32 %v149, %v169
    %vm171 = vcmp.eq.f32.partialorder %v149, inf
    %v172 = vsel %vm171, %v149, %v170
    %vm173 = vcmp.eq.f32.partialorder %v149, 0.0
    %v174 = vand.u32 %v149, 2147483648
    %v175 = vsel %vm173, %v174, %v172
    %v176 = vrsqrt.pop %v151
    %v177 = vmul.f32 %v151, %v176
    %vm178 = vcmp.eq.f32.partialorder %v151, inf
    %v179 = vsel %vm178, %v151, %v177
    %vm180 = vcmp.eq.f32.partialorder %v151, 0.0
    %v181 = vand.u32 %v151, 2147483648
    %v182 = vsel %vm180, %v181, %v179
    %v183 = vmul.f32 %v167, %v175
    %v184 = vmul.f32 %v168, %v182
    %v185 = vmul.f32 %v159, %v183
    %v186 = vmul.f32 %v160, %v184
    %187 = vst [vmem:[#allocation7] sm:$0xff] %v185
    %188 = vst [vmem:[#allocation7 + $0x8] sm:$0xff] %v186
    // Predicated region
    $region26: #{tpu_custom_call.1} parent=1 // pred_check
      _
    $region27: #{tpu_custom_call.1} parent=1 // pred_check_branch
      %190 = sbr.rel (0) target = $region29
    $region28: #{tpu_custom_call.1} parent=1 // pred_region
      %s192 = ssub.s32 256, 256
      %193 = vsyncadd [#allocation4], %s192
      %s194 = sshll.u32 [#allocation7], 4
      %s195 = int_to_ptr.vmem [resolvable:$true] %s194
      %200 = dma.vmem_to_hbm [thread:$0]  %s195, 256, %s4, [#allocation4], 128, 128, 8
    $region29: #{tpu_custom_call.1} parent=1 // pred_fallthru
      _
    // Predicated region
    $region30: #{tpu_custom_call.1} parent=1 // pred_check
      _
    $region31: #{tpu_custom_call.1} parent=1 // pred_check_branch
      %202 = sbr.rel (0) target = $region33
    $region32: #{tpu_custom_call.1} parent=1 // pred_region
      %203 = dma.done [#allocation4], 256
    $region33: #{tpu_custom_call.1} parent=1 // pred_fallthru
      _
    %204 = vsyncpa [#allocation3], 1
    %205 = vsyncpa [#allocation6], 1
    %206 = vsyncpa [#allocation4], 1

</llo_original>
